<compile_context>
chip_gen: v6e
topology: v6e:2x2x1
jax: 0.10.0
libtpu: 0.0.40
codegen_flags: <defaults>
</compile_context>

<pallas_src>
import functools

import jax
import jax.numpy as jnp
from jax.experimental import pallas as pl
from jax.experimental.pallas import tpu as pltpu

EPS = 1e-5          # BatchNorm1d default eps
NEG_SLOPE = 0.2     # LeakyReLU negative slope


def _leaky(x):
    # LeakyReLU(0.2): x for x>=0, 0.2*x for x<0
    return jnp.maximum(x, NEG_SLOPE * x)


# ---------------------------------------------------------------------------
# Pass 1: weighted neighbor aggregation + Linear(512,512) + partial BN stats
# ---------------------------------------------------------------------------
def _agg_linear_kernel(fg_ref, s_ref, wc_ref, bc_ref, y_ref, stats_ref,
                       *, tm, m_real, m_pad):
    """
    fg_ref   : (k, TM, 512) bf16  gathered neighbor features (tile of rows)
    s_ref    : (TM, k)      f32   per-neighbor learned scalar weights (R-MLP)
    wc_ref   : (512, 512)   bf16  Linear weight (in, out layout), resident
    bc_ref   : (1, 512)     f32   Linear bias, resident
    y_ref    : (TM, 512)    bf16  pre-BN activations (consumed by pass 2)
    stats_ref: (1, 2, 512)  f32   per-tile sum / sum-of-squares (real rows only)
    """
    k = fg_ref.shape[0]
    s = s_ref[...]                                     # (TM, k) f32

    # Weighted sum over the k neighbors.  k is small & static -> unrolled.
    acc = s[:, 0:1] * fg_ref[0]                        # f32*bf16 -> f32
    for j in range(1, k):
        acc = acc + s[:, j:j + 1] * fg_ref[j]

    # Linear(512, 512): bf16 operands, f32 accumulation on the MXU.
    y = jnp.dot(acc.astype(wc_ref.dtype), wc_ref[...],
                preferred_element_type=jnp.float32) + bc_ref[...]
    y_ref[...] = y.astype(y_ref.dtype)                 # bf16 intermediate

    # Per-tile partial statistics for the global BatchNorm in pass 2.
    # Padded rows (which would contribute the bias bc) are masked out.
    if m_pad == m_real:
        ym = y
    else:
        row0 = pl.program_id(0) * tm
        rows = jax.lax.broadcasted_iota(jnp.int32, (tm, 1), 0) + row0
        ym = y * (rows < m_real).astype(jnp.float32)
    stats_ref[0, 0:1, :] = jnp.sum(ym, axis=0, keepdims=True)
    stats_ref[0, 1:2, :] = jnp.sum(ym * y, axis=0, keepdims=True)


# ---------------------------------------------------------------------------
# Pass 2: BatchNorm1d (global batch statistics) + LeakyReLU
# ---------------------------------------------------------------------------
def _bn_act_kernel(y_ref, stats_ref, gamma_ref, beta_ref, o_ref, *, inv_m):
    """
    y_ref    : (TM2, 512) bf16  pre-BN activations
    stats_ref: (2, 512)   f32   row 0 = sum(y), row 1 = sum(y*y) over real rows
    gamma/beta: (1, 512)  f32   BatchNorm affine parameters
    o_ref    : (TM2, 512) f32
    """
    stats = stats_ref[...]
    mean = stats[0:1, :] * inv_m
    var = jnp.maximum(stats[1:2, :] * inv_m - mean * mean, 0.0)   # biased var
    scale = gamma_ref[...] * jax.lax.rsqrt(var + EPS)
    shift = beta_ref[...] - mean * scale
    y = y_ref[...].astype(jnp.float32)
    o_ref[...] = _leaky(y * scale + shift)


# ---------------------------------------------------------------------------
# Parameters (deterministic synthetic values matching the module's shapes)
# ---------------------------------------------------------------------------
def init_params(key):
    def lin(kk, fan_in, fan_out):
        kw, kb = jax.random.split(kk)
        s = 1.0 / jnp.sqrt(jnp.float32(fan_in))
        w = jax.random.uniform(kw, (fan_in, fan_out), jnp.float32, -s, s)
        b = jax.random.uniform(kb, (1, fan_out), jnp.float32, -s, s)
        return w, b

    k1, k2, k3, k4 = jax.random.split(key, 4)
    w1, b1 = lin(k1, 10, 10)       # R[0]: Linear(10, 10)
    w2, b2 = lin(k2, 10, 10)       # R[2]: Linear(10, 10)
    w3, b3 = lin(k3, 10, 1)        # R[4]: Linear(10, 1)
    wc, bc = lin(k4, 512, 512)     # conv[0]: Linear(512, 512)
    gamma = jnp.ones((1, 512), jnp.float32)   # BatchNorm1d weight
    beta = jnp.zeros((1, 512), jnp.float32)   # BatchNorm1d bias
    return dict(w1=w1, b1=b1, w2=w2, b2=b2, w3=w3, b3=b3,
                wc=wc, bc=bc, gamma=gamma, beta=beta)


# ---------------------------------------------------------------------------
# Tiling helpers
# ---------------------------------------------------------------------------
def _choose_tile(m, target):
    """Pass-1 row tile (multiple of 256 when M is large) + padded row count."""
    if m >= target:
        tm = (target // 256) * 256 or target
    else:
        tm = -(-m // 8) * 8                      # small M: round up to sublanes
    m_pad = -(-m // tm) * tm
    return tm, m_pad


def _pass2_tile(tm1, nt1, cap):
    """Largest multiple of tm1 that divides the padded M and is <= cap."""
    best = 1
    for mult in range(1, nt1 + 1):
        if nt1 % mult == 0 and tm1 * mult <= cap:
            best = mult
    return tm1 * best


def _vmem_limit(per_step_bytes, resident_bytes):
    """Scoped-VMEM limit from the tile budget (streams are double-buffered).

    2x headroom for compiler temps, clamped to 48 MiB so the limit stays below
    v7x's 64 MiB per-core VMEM while raising v5e's 16 MiB default.
    """
    need = 2 * per_step_bytes + resident_bytes
    return int(max(32 << 20, min(2 * need + (8 << 20), 48 << 20)))


# ---------------------------------------------------------------------------
# Wrapper: kNN / gather / geometric features / R-MLP glue + the two kernels
# ---------------------------------------------------------------------------
def local_gcn(F, V, params, *, k, n_views, row_tile=512, pass2_cap=2048):
    """
    F: (B, N, 512) features, V: (B, N, 3) points.
    Returns (B*N // n_views, n_views, 512), matching LocalGCN.forward.
    """
    B, N, C = F.shape
    assert C == 512
    M = B * N

    # --- knn (square_distance + topk, symmetric distances) -----------------
    d = -2.0 * jnp.einsum("bnc,bmc->bnm", V, V)
    sq = jnp.sum(V * V, axis=-1)
    d = d + sq[:, :, None] + sq[:, None, :]              # (B, N, N)
    _, idx = jax.lax.top_k(-d, k)                        # (B, N, k) nearest

    # --- geometric feature v_F = [v0, v, v0-v, ||v0-v||] (tiny) ------------
    Vg = jax.vmap(lambda v, i: v[i])(V, idx)             # (B, N, k, 3)
    v0 = jnp.broadcast_to(Vg[:, :, :1, :], Vg.shape)
    diff = v0 - Vg
    nrm = jnp.sqrt(jnp.sum(diff * diff, axis=-1, keepdims=True))
    vF = jnp.concatenate([v0, Vg, diff, nrm], axis=-1)   # (B, N, k, 10)

    # --- tiny R-MLP (10->10->10->1) in plain JAX ---------------------------
    h = _leaky(vF @ params["w1"] + params["b1"])
    h = _leaky(h @ params["w2"] + params["b2"])
    s = (h @ params["w3"] + params["b3"])                # (B, N, k, 1)
    s = s.reshape(M, k).astype(jnp.float32)              # (M, k)

    # --- gather neighbor features ONCE, in bf16, in the final layout -------
    Fflat = F.reshape(M, C).astype(jnp.bfloat16)         # (M, 512) bf16
    gidx = idx + jnp.arange(B, dtype=idx.dtype)[:, None, None] * N
    gidx = gidx.reshape(M, k).T                          # (k, M) flat rows
    fg_k = jnp.take(Fflat, gidx, axis=0)                 # (k, M, 512) bf16

    # --- tiling: pad M up to a tile multiple (no monolithic fallback) ------
    tm1, m_pad = _choose_tile(M, row_tile)
    nt1 = m_pad // tm1
    if m_pad != M:
        pad = m_pad - M
        fg_k = jnp.pad(fg_k, ((0, 0), (0, pad), (0, 0)))
        s = jnp.pad(s, ((0, pad), (0, 0)))

    wc = params["wc"].astype(jnp.bfloat16)               # native MXU bf16 mode
    bc = params["bc"].astype(jnp.float32)

    # ---- pass 1: aggregation + Linear, per-tile BN partial sums ------------
    per_step1 = (k * tm1 * C * 2 + tm1 * k * 4 + tm1 * C * 2 + 2 * C * 4)
    resident1 = 2 * (C * C * 2 + C * 4)  # wc/bc (double-buffered by default)
    # TODO(synk): pipeline_mode=pl.Buffered(1) on the constant wc/bc blocks
    # would reclaim one buffer each; skipped for lowering portability.
    cp1 = pltpu.CompilerParams(
        dimension_semantics=("parallel",),
        vmem_limit_bytes=_vmem_limit(per_step1, resident1))

    y, stats_part = pl.pallas_call(
        functools.partial(_agg_linear_kernel, tm=tm1, m_real=M, m_pad=m_pad),
        grid=(nt1,),
        in_specs=[
            pl.BlockSpec((k, tm1, C), lambda i: (0, i, 0)),   # fg (bf16 stream)
            pl.BlockSpec((tm1, k), lambda i: (i, 0)),         # per-neighbor s
            pl.BlockSpec((C, C), lambda i: (0, 0)),           # wc (resident)
            pl.BlockSpec((1, C), lambda i: (0, 0)),           # bc (resident)
        ],
        out_specs=[
            pl.BlockSpec((tm1, C), lambda i: (i, 0)),         # y (bf16)
            pl.BlockSpec((1, 2, C), lambda i: (i, 0, 0)),     # partial stats
        ],
        out_shape=[
            jax.ShapeDtypeStruct((m_pad, C), jnp.bfloat16),
            jax.ShapeDtypeStruct((nt1, 2, C), jnp.float32),
        ],
        compiler_params=cp1,
    )(fg_k, s, wc, bc)

    # Global BatchNorm statistics: tiny cross-tile reduction in the wrapper.
    # TODO(synk): E[y^2]-E[y]^2 in f32 can cancel for very large M; a Chan-style
    # centered combine would be more robust if tolerances are tight.
    stats = stats_part.sum(axis=0)                        # (2, C)

    # ---- pass 2: BatchNorm (global batch stats) + LeakyReLU ----------------
    tm2 = _pass2_tile(tm1, nt1, pass2_cap)
    nt2 = m_pad // tm2
    per_step2 = tm2 * C * 2 + tm2 * C * 4
    resident2 = 2 * (2 * C * 4 + 2 * C * 4)
    cp2 = pltpu.CompilerParams(
        dimension_semantics=("parallel",),
        vmem_limit_bytes=_vmem_limit(per_step2, resident2))

    out = pl.pallas_call(
        functools.partial(_bn_act_kernel, inv_m=1.0 / M),
        grid=(nt2,),
        in_specs=[
            pl.BlockSpec((tm2, C), lambda i: (i, 0)),         # y (bf16)
            pl.BlockSpec((2, C), lambda i: (0, 0)),           # reduced stats
            pl.BlockSpec((1, C), lambda i: (0, 0)),           # gamma
            pl.BlockSpec((1, C), lambda i: (0, 0)),           # beta
        ],
        out_specs=pl.BlockSpec((tm2, C), lambda i: (i, 0)),
        out_shape=jax.ShapeDtypeStruct((m_pad, C), jnp.float32),
        compiler_params=cp2,
    )(y, stats, params["gamma"], params["beta"])

    # TODO(synk): BatchNorm running_mean/running_var are never updated — this
    # matches only the stateless training-mode forward math.
    out = out[:M]
    return out.reshape(-1, n_views, C)


if __name__ == "__main__":
    key = jax.random.PRNGKey(0)
    k_in, k_F, k_V = jax.random.split(key, 3)

    # Small correctness smoke test (N == n_views, C == 512 fixed by the module).
    B, n_views, k = 2, 8, 4
    C = 512
    F = jax.random.normal(k_F, (B, n_views, C), jnp.float32)
    V = jax.random.normal(k_V, (B, n_views, 3), jnp.float32)
    params = init_params(k_in)

    out = local_gcn(F, V, params, k=k, n_views=n_views)
    jax.block_until_ready(out)
    assert out.shape == (B, n_views, C), out.shape
    print("KERNEL_OK")
</pallas_src>

<mosaic_0001>
module attributes {stable_mosaic.version = 11 : i64} {
  func.func @_agg_linear_kernel(%arg0: i32, %arg1: memref<4x16x512xbf16, #tpu.memory_space<vmem>>, %arg2: memref<16x4xf32, #tpu.memory_space<vmem>>, %arg3: memref<512x512xbf16, #tpu.memory_space<vmem>>, %arg4: memref<1x512xf32, #tpu.memory_space<vmem>>, %arg5: memref<16x512xbf16, #tpu.memory_space<vmem>>, %arg6: memref<1x2x512xf32, #tpu.memory_space<vmem>>) attributes {dimension_semantics = [#tpu.dimension_semantics<parallel>], iteration_bounds = array<i64: 1>, scalar_prefetch = 0 : i64, scratch_operands = 0 : i64, tpu.core_type = #tpu.core_type<tc>, window_params = [{transform_indices = @transform_0, window_bounds = array<i64: 4, 16, 512>}, {transform_indices = @transform_1, window_bounds = array<i64: 16, 4>}, {pipeline_mode = #tpu.pipeline_mode<synchronous>, transform_indices = @transform_2, window_bounds = array<i64: 512, 512>}, {pipeline_mode = #tpu.pipeline_mode<synchronous>, transform_indices = @transform_3, window_bounds = array<i64: 1, 512>}, {transform_indices = @transform_4, window_bounds = array<i64: 16, 512>}, {transform_indices = @transform_5, window_bounds = array<i64: 1, 2, 512>}]} {
    %c0 = arith.constant 0 : index
    %c0_0 = arith.constant 0 : index
    %0 = vector.load %arg2[%c0, %c0_0] : memref<16x4xf32, #tpu.memory_space<vmem>>, vector<16x4xf32>
    %1 = vector.extract_strided_slice %0 {offsets = [0, 0], sizes = [16, 1], strides = [1, 1]} : vector<16x4xf32> to vector<16x1xf32>
    %c0_1 = arith.constant 0 : index
    %c0_2 = arith.constant 0 : index
    %c0_3 = arith.constant 0 : index
    %2 = vector.load %arg1[%c0_1, %c0_2, %c0_3] : memref<4x16x512xbf16, #tpu.memory_space<vmem>>, vector<1x16x512xbf16>
    %3 = vector.shape_cast %2 : vector<1x16x512xbf16> to vector<16x512xbf16>
    %4 = arith.extf %3 : vector<16x512xbf16> to vector<16x512xf32>
    %5 = vector.broadcast %1 : vector<16x1xf32> to vector<16x512xf32>
    %6 = arith.mulf %5, %4 : vector<16x512xf32>
    %7 = vector.extract_strided_slice %0 {offsets = [0, 1], sizes = [16, 1], strides = [1, 1]} : vector<16x4xf32> to vector<16x1xf32>
    %c1 = arith.constant 1 : index
    %c0_4 = arith.constant 0 : index
    %c0_5 = arith.constant 0 : index
    %8 = vector.load %arg1[%c1, %c0_4, %c0_5] : memref<4x16x512xbf16, #tpu.memory_space<vmem>>, vector<1x16x512xbf16>
    %9 = vector.shape_cast %8 : vector<1x16x512xbf16> to vector<16x512xbf16>
    %10 = arith.extf %9 : vector<16x512xbf16> to vector<16x512xf32>
    %11 = vector.broadcast %7 : vector<16x1xf32> to vector<16x512xf32>
    %12 = arith.mulf %11, %10 : vector<16x512xf32>
    %13 = arith.addf %6, %12 : vector<16x512xf32>
    %14 = vector.extract_strided_slice %0 {offsets = [0, 2], sizes = [16, 1], strides = [1, 1]} : vector<16x4xf32> to vector<16x1xf32>
    %c2 = arith.constant 2 : index
    %c0_6 = arith.constant 0 : index
    %c0_7 = arith.constant 0 : index
    %15 = vector.load %arg1[%c2, %c0_6, %c0_7] : memref<4x16x512xbf16, #tpu.memory_space<vmem>>, vector<1x16x512xbf16>
    %16 = vector.shape_cast %15 : vector<1x16x512xbf16> to vector<16x512xbf16>
    %17 = arith.extf %16 : vector<16x512xbf16> to vector<16x512xf32>
    %18 = vector.broadcast %14 : vector<16x1xf32> to vector<16x512xf32>
    %19 = arith.mulf %18, %17 : vector<16x512xf32>
    %20 = arith.addf %13, %19 : vector<16x512xf32>
    %21 = vector.extract_strided_slice %0 {offsets = [0, 3], sizes = [16, 1], strides = [1, 1]} : vector<16x4xf32> to vector<16x1xf32>
    %c3 = arith.constant 3 : index
    %c0_8 = arith.constant 0 : index
    %c0_9 = arith.constant 0 : index
    %22 = vector.load %arg1[%c3, %c0_8, %c0_9] : memref<4x16x512xbf16, #tpu.memory_space<vmem>>, vector<1x16x512xbf16>
    %23 = vector.shape_cast %22 : vector<1x16x512xbf16> to vector<16x512xbf16>
    %24 = arith.extf %23 : vector<16x512xbf16> to vector<16x512xf32>
    %25 = vector.broadcast %21 : vector<16x1xf32> to vector<16x512xf32>
    %26 = arith.mulf %25, %24 : vector<16x512xf32>
    %27 = arith.addf %20, %26 : vector<16x512xf32>
    %28 = arith.truncf %27 : vector<16x512xf32> to vector<16x512xbf16>
    %c0_10 = arith.constant 0 : index
    %c0_11 = arith.constant 0 : index
    %29 = vector.load %arg3[%c0_10, %c0_11] : memref<512x512xbf16, #tpu.memory_space<vmem>>, vector<512x512xbf16>
    %cst = arith.constant dense<0.000000e+00> : vector<16x512xf32>
    %30 = tpu.matmul %28, %29, %cst {dimension_numbers = #tpu.dot_dimension_numbers<[1], [0], [0], [1], [0, 0, 1, 1], [], []>} : vector<16x512xbf16>, vector<512x512xbf16>, vector<16x512xf32> -> vector<16x512xf32>
    %c0_12 = arith.constant 0 : index
    %c0_13 = arith.constant 0 : index
    %31 = vector.load %arg4[%c0_12, %c0_13] : memref<1x512xf32, #tpu.memory_space<vmem>>, vector<1x512xf32>
    %32 = vector.broadcast %31 : vector<1x512xf32> to vector<16x512xf32>
    %33 = arith.addf %30, %32 : vector<16x512xf32>
    %34 = arith.truncf %33 : vector<16x512xf32> to vector<16x512xbf16>
    %c0_14 = arith.constant 0 : index
    %c0_15 = arith.constant 0 : index
    %35 = vector.load %arg5[%c0_14, %c0_15] : memref<16x512xbf16, #tpu.memory_space<vmem>>, vector<16x512xbf16>
    tpu.vector_store %arg5[%c0_14, %c0_15], %34 {strides = array<i32>} : memref<16x512xbf16, #tpu.memory_space<vmem>>, vector<16x512xbf16>,
    %cst_16 = arith.constant dense<0.000000e+00> : vector<512xf32>
    %36 = vector.multi_reduction <add>, %33, %cst_16 [0] : vector<16x512xf32> to vector<512xf32>
    %37 = vector.shape_cast %36 : vector<512xf32> to vector<1x512xf32>
    %c0_17 = arith.constant 0 : index
    %c0_18 = arith.constant 0 : index
    %c0_19 = arith.constant 0 : index
    %38 = vector.load %arg6[%c0_17, %c0_18, %c0_19] : memref<1x2x512xf32, #tpu.memory_space<vmem>>, vector<1x1x512xf32>
    %39 = vector.shape_cast %38 : vector<1x1x512xf32> to vector<1x512xf32>
    %40 = vector.shape_cast %37 : vector<1x512xf32> to vector<1x1x512xf32>
    tpu.vector_store %arg6[%c0_17, %c0_18, %c0_19], %40 {strides = array<i32>} : memref<1x2x512xf32, #tpu.memory_space<vmem>>, vector<1x1x512xf32>,
    %41 = arith.mulf %33, %33 : vector<16x512xf32>
    %cst_20 = arith.constant dense<0.000000e+00> : vector<512xf32>
    %42 = vector.multi_reduction <add>, %41, %cst_20 [0] : vector<16x512xf32> to vector<512xf32>
    %43 = vector.shape_cast %42 : vector<512xf32> to vector<1x512xf32>
    %c0_21 = arith.constant 0 : index
    %c1_22 = arith.constant 1 : index
    %c0_23 = arith.constant 0 : index
    %44 = vector.load %arg6[%c0_21, %c1_22, %c0_23] : memref<1x2x512xf32, #tpu.memory_space<vmem>>, vector<1x1x512xf32>
    %45 = vector.shape_cast %44 : vector<1x1x512xf32> to vector<1x512xf32>
    %46 = vector.shape_cast %43 : vector<1x512xf32> to vector<1x1x512xf32>
    tpu.vector_store %arg6[%c0_21, %c1_22, %c0_23], %46 {strides = array<i32>} : memref<1x2x512xf32, #tpu.memory_space<vmem>>, vector<1x1x512xf32>,
    return
  }
  func.func @transform_0(%arg0: i32) -> (i32, i32, i32) {
    %c0_i32 = arith.constant 0 : i32
    %c0_i32_0 = arith.constant 0 : i32
    %c0_i32_1 = arith.constant 0 : i32
    return %c0_i32, %arg0, %c0_i32_0 : i32, i32, i32
  }
  func.func @transform_1(%arg0: i32) -> (i32, i32) {
    %c0_i32 = arith.constant 0 : i32
    %c0_i32_0 = arith.constant 0 : i32
    return %arg0, %c0_i32 : i32, i32
  }
  func.func @transform_2(%arg0: i32) -> (i32, i32) {
    %c0_i32 = arith.constant 0 : i32
    %c0_i32_0 = arith.constant 0 : i32
    %c0_i32_1 = arith.constant 0 : i32
    return %c0_i32, %c0_i32_0 : i32, i32
  }
  func.func @transform_3(%arg0: i32) -> (i32, i32) {
    %c0_i32 = arith.constant 0 : i32
    %c0_i32_0 = arith.constant 0 : i32
    %c0_i32_1 = arith.constant 0 : i32
    return %c0_i32, %c0_i32_0 : i32, i32
  }
  func.func @transform_4(%arg0: i32) -> (i32, i32) {
    %c0_i32 = arith.constant 0 : i32
    %c0_i32_0 = arith.constant 0 : i32
    return %arg0, %c0_i32 : i32, i32
  }
  func.func @transform_5(%arg0: i32) -> (i32, i32, i32) {
    %c0_i32 = arith.constant 0 : i32
    %c0_i32_0 = arith.constant 0 : i32
    %c0_i32_1 = arith.constant 0 : i32
    return %arg0, %c0_i32, %c0_i32_0 : i32, i32, i32
  }
}

</mosaic_0001>

<llo_original>
// kernel: tpu_custom_call.1
$region0: #{tpu_custom_call.1}
  #allocation0 [shape = 'u32[]', space=smem, size = 0x4, offset = 0x4, fixed_abs, tag = 'smem constant byte address 0x4 - core index']
  #allocation1 [shape = 'u32[144,128]{1,0:T(1,128)}', space=vmem, size = 0x12000, scoped, tag = 'internal scratch']
  %s0 = inlined_call_operand.hbm [shape: bf16[4,16,512], index: 0, kind: input, shape index: {}]
  %s1 = inlined_call_operand.vmem [shape: f32[16,4], index: 1, kind: input, shape index: {}]
  %s2 = inlined_call_operand.hbm [shape: bf16[512,512], index: 2, kind: input, shape index: {}]
  %s3 = inlined_call_operand.vmem [shape: f32[1,512], index: 3, kind: input, shape index: {}]
  %s4 = inlined_call_operand.hbm [shape: bf16[16,512], index: 4, kind: output, shape index: {0}]
  %s5 = inlined_call_operand.hbm [shape: f32[1,2,512], index: 5, kind: output, shape index: {1}]
  %6 = xla_tuple %s4, %s5
  %s7 = sld [smem:[#allocation0]]
  $region42: #{tpu_custom_call.1} parent=0
    _
  %s9 = ssub.s32 1, %s7
  %s10 = scalar_select 0, %s9, %s7
  $region1: #{tpu_custom_call.1} parent=0
    #allocation2 [shape = 'u8[65536]{0}', space=vmem, size = 0x10000, scoped, tag = 'input window, operand 0, single buffered']
    #allocation3 [shape = 's32[1]{0}', space=sflag, size = 0x4, scoped, tag = 'scoped memory for tpu_custom_call.1']
    #allocation4 [shape = 's32[1]{0}', space=sflag, size = 0x4, scoped, tag = 'scoped memory for tpu_custom_call.1']
    #allocation5 [shape = 'u8[524288]{0}', space=vmem, size = 0x80000, scoped, tag = 'input window, operand 2, single buffered']
    #allocation6 [shape = 's32[1]{0}', space=sflag, size = 0x4, scoped, tag = 'scoped memory for tpu_custom_call.1']
    #allocation7 [shape = 'u8[16384]{0}', space=vmem, size = 0x4000, scoped, tag = 'output window, operand 0, single buffered']
    #allocation8 [shape = 'u8[4096]{0}', space=vmem, size = 0x1000, scoped, tag = 'output window, operand 1, single buffered']
    #allocation9 [shape = 's32[1]{0}', space=sflag, size = 0x4, scoped, tag = 'scoped memory for tpu_custom_call.1']
    %11 = vsyncpa [#allocation3], 0
    %12 = vsyncpa [#allocation6], 0
    %13 = vsyncpa [#allocation4], 0
    %14 = vsyncpa [#allocation9], 0
    // Predicated region
    $region2: #{tpu_custom_call.1} parent=1 // pred_check
      _
    $region3: #{tpu_custom_call.1} parent=1 // pred_check_branch
      %16 = sbr.rel (0) target = $region5
    $region4: #{tpu_custom_call.1} parent=1 // pred_region
      %s18 = ssub.s32 2048, 2048
      %19 = vsyncadd [#allocation3], %s18
      %s20 = sshll.u32 [#allocation2], 4
      %s21 = int_to_ptr.vmem [resolvable:$true] %s20
      %26 = dma.hbm_to_vmem [thread:$0]  %s0, 2048, %s21, [#allocation3], 256, 256, 16
    $region5: #{tpu_custom_call.1} parent=1 // pred_fallthru
      _
    // Predicated region
    $region6: #{tpu_custom_call.1} parent=1 // pred_check
      _
    $region7: #{tpu_custom_call.1} parent=1 // pred_check_branch
      %28 = sbr.rel (0) target = $region9
    $region8: #{tpu_custom_call.1} parent=1 // pred_region
      _
    $region9: #{tpu_custom_call.1} parent=1 // pred_fallthru
      _
    // Predicated region
    $region10: #{tpu_custom_call.1} parent=1 // pred_check
      _
    $region11: #{tpu_custom_call.1} parent=1 // pred_check_branch
      %30 = sbr.rel (0) target = $region13
    $region12: #{tpu_custom_call.1} parent=1 // pred_region
      %s32 = ssub.s32 16384, 16384
      %33 = vsyncadd [#allocation6], %s32
      %s34 = sshll.u32 [#allocation5], 4
      %s35 = int_to_ptr.vmem [resolvable:$true] %s34
      %40 = dma.hbm_to_vmem [thread:$0]  %s2, 16384, %s35, [#allocation6], 256, 256, 16
    $region13: #{tpu_custom_call.1} parent=1 // pred_fallthru
      _
    // Predicated region
    $region14: #{tpu_custom_call.1} parent=1 // pred_check
      _
    $region15: #{tpu_custom_call.1} parent=1 // pred_check_branch
      %42 = sbr.rel (0) target = $region17
    $region16: #{tpu_custom_call.1} parent=1 // pred_region
      _
    $region17: #{tpu_custom_call.1} parent=1 // pred_fallthru
      _
    // Predicated region
    $region18: #{tpu_custom_call.1} parent=1 // pred_check
      _
    $region19: #{tpu_custom_call.1} parent=1 // pred_check_branch
      %44 = sbr.rel (0) target = $region21
    $region20: #{tpu_custom_call.1} parent=1 // pred_region
      %45 = dma.done [#allocation3], 2048
    $region21: #{tpu_custom_call.1} parent=1 // pred_fallthru
      _
    // Predicated region
    $region22: #{tpu_custom_call.1} parent=1 // pred_check
      _
    $region23: #{tpu_custom_call.1} parent=1 // pred_check_branch
      %47 = sbr.rel (0) target = $region25
    $region24: #{tpu_custom_call.1} parent=1 // pred_region
      %48 = dma.done [#allocation6], 16384
    $region25: #{tpu_custom_call.1} parent=1 // pred_fallthru
      _
    %v49 = vld [vmem:[%s1] sm:$0xff]
    %v50 = vld [vmem:[%s1 + $0x8] sm:$0xff]
    %v51 = vld [vmem:[#allocation2] sm:$0xff]
    %v52 = vld [vmem:[#allocation2 + $0x8] sm:$0xff]
    %v53 = vld [vmem:[#allocation2 + $0x10] sm:$0xff]
    %v54 = vld [vmem:[#allocation2 + $0x18] sm:$0xff]
    %v55 = vunpack.c.l.bf16 %v51
    %v56 = vunpack.c.h.bf16 %v51
    %v57 = vunpack.c.l.bf16 %v52
    %v58 = vunpack.c.h.bf16 %v52
    %v59 = vunpack.c.l.bf16 %v53
    %v60 = vunpack.c.h.bf16 %v53
    %v61 = vunpack.c.l.bf16 %v54
    %v62 = vunpack.c.h.bf16 %v54
    %64 = vset.pattern.permute.xlu0 0
    %65 = vperm.xlu0 %64, %v49
    %v66 = vpop.permute.xlu0 %65
    %69 = vset.pattern.permute.xlu0 0
    %70 = vperm.xlu0 %69, %v50
    %v71 = vpop.permute.xlu0 %70
    %v73 = vmul.f32 %v66, %v55
    %v74 = vmul.f32 %v66, %v56
    %v75 = vmul.f32 %v66, %v57
    %v76 = vmul.f32 %v66, %v58
    %v77 = vmul.f32 %v71, %v59
    %v78 = vmul.f32 %v71, %v60
    %v79 = vmul.f32 %v71, %v61
    %v80 = vmul.f32 %v71, %v62
    %s81 = scalar_lea.vmem [#allocation2], 32
    %v82 = vld [vmem:[%s81] sm:$0xff]
    %v83 = vld [vmem:[%s81 + $0x8] sm:$0xff]
    %v84 = vld [vmem:[%s81 + $0x10] sm:$0xff]
    %v85 = vld [vmem:[%s81 + $0x18] sm:$0xff]
    %v86 = vunpack.c.l.bf16 %v82
    %v87 = vunpack.c.h.bf16 %v82
    %v88 = vunpack.c.l.bf16 %v83
    %v89 = vunpack.c.h.bf16 %v83
    %v90 = vunpack.c.l.bf16 %v84
    %v91 = vunpack.c.h.bf16 %v84
    %v92 = vunpack.c.l.bf16 %v85
    %v93 = vunpack.c.h.bf16 %v85
    %94 = vset.pattern.permute.xlu0 1
    %95 = vperm.xlu0 %94, %v49
    %v96 = vpop.permute.xlu0 %95
    %98 = vset.pattern.permute.xlu0 1
    %99 = vperm.xlu0 %98, %v50
    %v100 = vpop.permute.xlu0 %99
    %v102 = vmul.f32 %v96, %v86
    %v103 = vmul.f32 %v96, %v87
    %v104 = vmul.f32 %v96, %v88
    %v105 = vmul.f32 %v96, %v89
    %v106 = vmul.f32 %v100, %v90
    %v107 = vmul.f32 %v100, %v91
    %v108 = vmul.f32 %v100, %v92
    %v109 = vmul.f32 %v100, %v93
    %v110 = vadd.f32 %v73, %v102
    %v111 = vadd.f32 %v74, %v103
    %v112 = vadd.f32 %v75, %v104
    %v113 = vadd.f32 %v76, %v105
    %v114 = vadd.f32 %v77, %v106
    %v115 = vadd.f32 %v78, %v107
    %v116 = vadd.f32 %v79, %v108
    %v117 = vadd.f32 %v80, %v109
    %s118 = scalar_lea.vmem [#allocation2], 64
    %v119 = vld [vmem:[%s118] sm:$0xff]
    %v120 = vld [vmem:[%s118 + $0x8] sm:$0xff]
    %v121 = vld [vmem:[%s118 + $0x10] sm:$0xff]
    %v122 = vld [vmem:[%s118 + $0x18] sm:$0xff]
    %v123 = vunpack.c.l.bf16 %v119
    %v124 = vunpack.c.h.bf16 %v119
    %v125 = vunpack.c.l.bf16 %v120
    %v126 = vunpack.c.h.bf16 %v120
    %v127 = vunpack.c.l.bf16 %v121
    %v128 = vunpack.c.h.bf16 %v121
    %v129 = vunpack.c.l.bf16 %v122
    %v130 = vunpack.c.h.bf16 %v122
    %131 = vset.pattern.permute.xlu0 2
    %132 = vperm.xlu0 %131, %v49
    %v133 = vpop.permute.xlu0 %132
    %135 = vset.pattern.permute.xlu0 2
    %136 = vperm.xlu0 %135, %v50
    %v137 = vpop.permute.xlu0 %136
    %v139 = vmul.f32 %v133, %v123
    %v140 = vmul.f32 %v133, %v124
    %v141 = vmul.f32 %v133, %v125
    %v142 = vmul.f32 %v133, %v126
    %v143 = vmul.f32 %v137, %v127
    %v144 = vmul.f32 %v137, %v128
    %v145 = vmul.f32 %v137, %v129
    %v146 = vmul.f32 %v137, %v130
    %v147 = vadd.f32 %v110, %v139
    %v148 = vadd.f32 %v111, %v140
    %v149 = vadd.f32 %v112, %v141
    %v150 = vadd.f32 %v113, %v142
    %v151 = vadd.f32 %v114, %v143
    %v152 = vadd.f32 %v115, %v144
    %v153 = vadd.f32 %v116, %v145
    %v154 = vadd.f32 %v117, %v146
    %s155 = scalar_lea.vmem [#allocation2], 96
    %v156 = vld [vmem:[%s155] sm:$0xff]
    %v157 = vld [vmem:[%s155 + $0x8] sm:$0xff]
    %v158 = vld [vmem:[%s155 + $0x10] sm:$0xff]
    %v159 = vld [vmem:[%s155 + $0x18] sm:$0xff]
    %v160 = vunpack.c.l.bf16 %v156
    %v161 = vunpack.c.h.bf16 %v156
    %v162 = vunpack.c.l.bf16 %v157
    %v163 = vunpack.c.h.bf16 %v157
    %v164 = vunpack.c.l.bf16 %v158
    %v165 = vunpack.c.h.bf16 %v158
    %v166 = vunpack.c.l.bf16 %v159
    %v167 = vunpack.c.h.bf16 %v159
    %168 = vset.pattern.permute.xlu0 3
    %169 = vperm.xlu0 %168, %v49
    %v170 = vpop.permute.xlu0 %169
    %172 = vset.pattern.permute.xlu0 3
    %173 = vperm.xlu0 %172, %v50
    %v174 = vpop.permute.xlu0 %173
    %v176 = vmul.f32 %v170, %v160
    %v177 = vmul.f32 %v170, %v161
    %v178 = vmul.f32 %v170, %v162
    %v179 = vmul.f32 %v170, %v163
    %v180 = vmul.f32 %v174, %v164
    %v181 = vmul.f32 %v174, %v165
    %v182 = vmul.f32 %v174, %v166
    %v183 = vmul.f32 %v174, %v167
    %v184 = vadd.f32 %v147, %v176
    %v185 = vadd.f32 %v148, %v177
    %v186 = vadd.f32 %v149, %v178
    %v187 = vadd.f32 %v150, %v179
    %v188 = vadd.f32 %v151, %v180
    %v189 = vadd.f32 %v152, %v181
    %v190 = vadd.f32 %v153, %v182
    %v191 = vadd.f32 %v154, %v183
    %v192 = vpack.c.bf16 %v188, %v184
    %v193 = vpack.c.bf16 %v189, %v185
    %v194 = vpack.c.bf16 %v190, %v186
    %v195 = vpack.c.bf16 %v191, %v187
    %v196 = vld [vmem:[#allocation5] sm:$0xff]
    %v197 = vld [vmem:[#allocation5 + $0x8] sm:$0xff]
    %v198 = vld [vmem:[#allocation5 + $0x10] sm:$0xff]
    %v199 = vld [vmem:[#allocation5 + $0x18] sm:$0xff]
    %v200 = vld [vmem:[#allocation5 + $0x20] sm:$0xff]
    %v201 = vld [vmem:[#allocation5 + $0x28] sm:$0xff]
    %v202 = vld [vmem:[#allocation5 + $0x30] sm:$0xff]
    %v203 = vld [vmem:[#allocation5 + $0x38] sm:$0xff]
    %v204 = vld [vmem:[#allocation5 + $0x40] sm:$0xff]
    %v205 = vld [vmem:[#allocation5 + $0x48] sm:$0xff]
    %v206 = vld [vmem:[#allocation5 + $0x50] sm:$0xff]
    %v207 = vld [vmem:[#allocation5 + $0x58] sm:$0xff]
    %v208 = vld [vmem:[#allocation5 + $0x60] sm:$0xff]
    %v209 = vld [vmem:[#allocation5 + $0x68] sm:$0xff]
    %v210 = vld [vmem:[#allocation5 + $0x70] sm:$0xff]
    %v211 = vld [vmem:[#allocation5 + $0x78] sm:$0xff]
    %v212 = vld [vmem:[#allocation5 + $0x80] sm:$0xff]
    %v213 = vld [vmem:[#allocation5 + $0x88] sm:$0xff]
    %v214 = vld [vmem:[#allocation5 + $0x90] sm:$0xff]
    %v215 = vld [vmem:[#allocation5 + $0x98] sm:$0xff]
    %v216 = vld [vmem:[#allocation5 + $0xa0] sm:$0xff]
    %v217 = vld [vmem:[#allocation5 + $0xa8] sm:$0xff]
    %v218 = vld [vmem:[#allocation5 + $0xb0] sm:$0xff]
    %v219 = vld [vmem:[#allocation5 + $0xb8] sm:$0xff]
    %v220 = vld [vmem:[#allocation5 + $0xc0] sm:$0xff]
    %v221 = vld [vmem:[#allocation5 + $0xc8] sm:$0xff]
    %v222 = vld [vmem:[#allocation5 + $0xd0] sm:$0xff]
    %v223 = vld [vmem:[#allocation5 + $0xd8] sm:$0xff]
    %v224 = vld [vmem:[#allocation5 + $0xe0] sm:$0xff]
    %v225 = vld [vmem:[#allocation5 + $0xe8] sm:$0xff]
    %v226 = vld [vmem:[#allocation5 + $0xf0] sm:$0xff]
    %v227 = vld [vmem:[#allocation5 + $0xf8] sm:$0xff]
    %v228 = vld [vmem:[#allocation5 + $0x100] sm:$0xff]
    %v229 = vld [vmem:[#allocation5 + $0x108] sm:$0xff]
    %v230 = vld [vmem:[#allocation5 + $0x110] sm:$0xff]
    %v231 = vld [vmem:[#allocation5 + $0x118] sm:$0xff]
    %v232 = vld [vmem:[#allocation5 + $0x120] sm:$0xff]
    %v233 = vld [vmem:[#allocation5 + $0x128] sm:$0xff]
    %v234 = vld [vmem:[#allocation5 + $0x130] sm:$0xff]
    %v235 = vld [vmem:[#allocation5 + $0x138] sm:$0xff]
    %v236 = vld [vmem:[#allocation5 + $0x140] sm:$0xff]
    %v237 = vld [vmem:[#allocation5 + $0x148] sm:$0xff]
    %v238 = vld [vmem:[#allocation5 + $0x150] sm:$0xff]
    %v239 = vld [vmem:[#allocation5 + $0x158] sm:$0xff]
    %v240 = vld [vmem:[#allocation5 + $0x160] sm:$0xff]
    %v241 = vld [vmem:[#allocation5 + $0x168] sm:$0xff]
    %v242 = vld [vmem:[#allocation5 + $0x170] sm:$0xff]
    %v243 = vld [vmem:[#allocation5 + $0x178] sm:$0xff]
    %v244 = vld [vmem:[#allocation5 + $0x180] sm:$0xff]
    %v245 = vld [vmem:[#allocation5 + $0x188] sm:$0xff]
    %v246 = vld [vmem:[#allocation5 + $0x190] sm:$0xff]
    %v247 = vld [vmem:[#allocation5 + $0x198] sm:$0xff]
    %v248 = vld [vmem:[#allocation5 + $0x1a0] sm:$0xff]
    %v249 = vld [vmem:[#allocation5 + $0x1a8] sm:$0xff]
    %v250 = vld [vmem:[#allocation5 + $0x1b0] sm:$0xff]
    %v251 = vld [vmem:[#allocation5 + $0x1b8] sm:$0xff]
    %v252 = vld [vmem:[#allocation5 + $0x1c0] sm:$0xff]
    %v253 = vld [vmem:[#allocation5 + $0x1c8] sm:$0xff]
    %v254 = vld [vmem:[#allocation5 + $0x1d0] sm:$0xff]
    %v255 = vld [vmem:[#allocation5 + $0x1d8] sm:$0xff]
    %v256 = vld [vmem:[#allocation5 + $0x1e0] sm:$0xff]
    %v257 = vld [vmem:[#allocation5 + $0x1e8] sm:$0xff]
    %v258 = vld [vmem:[#allocation5 + $0x1f0] sm:$0xff]
    %v259 = vld [vmem:[#allocation5 + $0x1f8] sm:$0xff]
    %v260 = vld [vmem:[#allocation5 + $0x200] sm:$0xff]
    %v261 = vld [vmem:[#allocation5 + $0x208] sm:$0xff]
    %v262 = vld [vmem:[#allocation5 + $0x210] sm:$0xff]
    %v263 = vld [vmem:[#allocation5 + $0x218] sm:$0xff]
    %v264 = vld [vmem:[#allocation5 + $0x220] sm:$0xff]
    %v265 = vld [vmem:[#allocation5 + $0x228] sm:$0xff]
    %v266 = vld [vmem:[#allocation5 + $0x230] sm:$0xff]
    %v267 = vld [vmem:[#allocation5 + $0x238] sm:$0xff]
    %v268 = vld [vmem:[#allocation5 + $0x240] sm:$0xff]
    %v269 = vld [vmem:[#allocation5 + $0x248] sm:$0xff]
    %v270 = vld [vmem:[#allocation5 + $0x250] sm:$0xff]
    %v271 = vld [vmem:[#allocation5 + $0x258] sm:$0xff]
    %v272 = vld [vmem:[#allocation5 + $0x260] sm:$0xff]
    %v273 = vld [vmem:[#allocation5 + $0x268] sm:$0xff]
    %v274 = vld [vmem:[#allocation5 + $0x270] sm:$0xff]
    %v275 = vld [vmem:[#allocation5 + $0x278] sm:$0xff]
    %v276 = vld [vmem:[#allocation5 + $0x280] sm:$0xff]
    %v277 = vld [vmem:[#allocation5 + $0x288] sm:$0xff]
    %v278 = vld [vmem:[#allocation5 + $0x290] sm:$0xff]
    %v279 = vld [vmem:[#allocation5 + $0x298] sm:$0xff]
    %v280 = vld [vmem:[#allocation5 + $0x2a0] sm:$0xff]
    %v281 = vld [vmem:[#allocation5 + $0x2a8] sm:$0xff]
    %v282 = vld [vmem:[#allocation5 + $0x2b0] sm:$0xff]
    %v283 = vld [vmem:[#allocation5 + $0x2b8] sm:$0xff]
    %v284 = vld [vmem:[#allocation5 + $0x2c0] sm:$0xff]
    %v285 = vld [vmem:[#allocation5 + $0x2c8] sm:$0xff]
    %v286 = vld [vmem:[#allocation5 + $0x2d0] sm:$0xff]
    %v287 = vld [vmem:[#allocation5 + $0x2d8] sm:$0xff]
    %v288 = vld [vmem:[#allocation5 + $0x2e0] sm:$0xff]
    %v289 = vld [vmem:[#allocation5 + $0x2e8] sm:$0xff]
    %v290 = vld [vmem:[#allocation5 + $0x2f0] sm:$0xff]
    %v291 = vld [vmem:[#allocation5 + $0x2f8] sm:$0xff]
    %v292 = vld [vmem:[#allocation5 + $0x300] sm:$0xff]
    %v293 = vld [vmem:[#allocation5 + $0x308] sm:$0xff]
    %v294 = vld [vmem:[#allocation5 + $0x310] sm:$0xff]
    %v295 = vld [vmem:[#allocation5 + $0x318] sm:$0xff]
    %v296 = vld [vmem:[#allocation5 + $0x320] sm:$0xff]
    %v297 = vld [vmem:[#allocation5 + $0x328] sm:$0xff]
    %v298 = vld [vmem:[#allocation5 + $0x330] sm:$0xff]
    %v299 = vld [vmem:[#allocation5 + $0x338] sm:$0xff]
    %v300 = vld [vmem:[#allocation5 + $0x340] sm:$0xff]
    %v301 = vld [vmem:[#allocation5 + $0x348] sm:$0xff]
    %v302 = vld [vmem:[#allocation5 + $0x350] sm:$0xff]
    %v303 = vld [vmem:[#allocation5 + $0x358] sm:$0xff]
    %v304 = vld [vmem:[#allocation5 + $0x360] sm:$0xff]
    %v305 = vld [vmem:[#allocation5 + $0x368] sm:$0xff]
    %v306 = vld [vmem:[#allocation5 + $0x370] sm:$0xff]
    %v307 = vld [vmem:[#allocation5 + $0x378] sm:$0xff]
    %v308 = vld [vmem:[#allocation5 + $0x380] sm:$0xff]
    %v309 = vld [vmem:[#allocation5 + $0x388] sm:$0xff]
    %v310 = vld [vmem:[#allocation5 + $0x390] sm:$0xff]
    %v311 = vld [vmem:[#allocation5 + $0x398] sm:$0xff]
    %v312 = vld [vmem:[#allocation5 + $0x3a0] sm:$0xff]
    %v313 = vld [vmem:[#allocation5 + $0x3a8] sm:$0xff]
    %v314 = vld [vmem:[#allocation5 + $0x3b0] sm:$0xff]
    %v315 = vld [vmem:[#allocation5 + $0x3b8] sm:$0xff]
    %v316 = vld [vmem:[#allocation5 + $0x3c0] sm:$0xff]
    %v317 = vld [vmem:[#allocation5 + $0x3c8] sm:$0xff]
    %v318 = vld [vmem:[#allocation5 + $0x3d0] sm:$0xff]
    %v319 = vld [vmem:[#allocation5 + $0x3d8] sm:$0xff]
    %v320 = vld [vmem:[#allocation5 + $0x3e0] sm:$0xff]
    %v321 = vld [vmem:[#allocation5 + $0x3e8] sm:$0xff]
    %v322 = vld [vmem:[#allocation5 + $0x3f0] sm:$0xff]
    %v323 = vld [vmem:[#allocation5 + $0x3f8] sm:$0xff]
    %v324 = vld [vmem:[%s3] sm:$0xf]
    %v326 = vlaneseq
    %v327 = vshrl.u32 %v326, 7
    %v328 = vsub.s32 0, %v327
    %v329 = vrot.slane %v324, %v328
    %v330 = vlaneseq
    %v331 = vshrl.u32 %v330, 7
    %v332 = vsub.s32 1, %v331
    %v333 = vrot.slane %v324, %v332
    %v334 = vlaneseq
    %v335 = vshrl.u32 %v334, 7
    %v336 = vsub.s32 2, %v335
    %v337 = vrot.slane %v324, %v336
    %v338 = vlaneseq
    %v339 = vshrl.u32 %v338, 7
    %v340 = vsub.s32 3, %v339
    %v341 = vrot.slane %v324, %v340
    %v474 = vunpack.c.l.b16 %v196
    %v475 = vunpack.c.h.b16 %v196
    %v476 = vunpack.c.l.b16 %v197
    %v477 = vunpack.c.h.b16 %v197
    %v478 = vunpack.c.l.b16 %v198
    %v479 = vunpack.c.h.b16 %v198
    %v480 = vunpack.c.l.b16 %v199
    %v481 = vunpack.c.h.b16 %v199
    %v482 = vunpack.c.l.b16 %v200
    %v483 = vunpack.c.h.b16 %v200
    %v484 = vunpack.c.l.b16 %v201
    %v485 = vunpack.c.h.b16 %v201
    %v486 = vunpack.c.l.b16 %v202
    %v487 = vunpack.c.h.b16 %v202
    %v488 = vunpack.c.l.b16 %v203
    %v489 = vunpack.c.h.b16 %v203
    %v490 = vunpack.c.l.b16 %v204
    %v491 = vunpack.c.h.b16 %v204
    %v492 = vunpack.c.l.b16 %v205
    %v493 = vunpack.c.h.b16 %v205
    %v494 = vunpack.c.l.b16 %v206
    %v495 = vunpack.c.h.b16 %v206
    %v496 = vunpack.c.l.b16 %v207
    %v497 = vunpack.c.h.b16 %v207
    %v498 = vunpack.c.l.b16 %v208
    %v499 = vunpack.c.h.b16 %v208
    %v500 = vunpack.c.l.b16 %v209
    %v501 = vunpack.c.h.b16 %v209
    %v502 = vunpack.c.l.b16 %v210
    %v503 = vunpack.c.h.b16 %v210
    %v504 = vunpack.c.l.b16 %v211
    %v505 = vunpack.c.h.b16 %v211
    %v506 = vunpack.c.l.b16 %v212
    %v507 = vunpack.c.h.b16 %v212
    %v508 = vunpack.c.l.b16 %v213
    %v509 = vunpack.c.h.b16 %v213
    %v510 = vunpack.c.l.b16 %v214
    %v511 = vunpack.c.h.b16 %v214
    %v512 = vunpack.c.l.b16 %v215
    %v513 = vunpack.c.h.b16 %v215
    %v514 = vunpack.c.l.b16 %v216
    %v515 = vunpack.c.h.b16 %v216
    %v516 = vunpack.c.l.b16 %v217
    %v517 = vunpack.c.h.b16 %v217
    %v518 = vunpack.c.l.b16 %v218
    %v519 = vunpack.c.h.b16 %v218
    %v520 = vunpack.c.l.b16 %v219
    %v521 = vunpack.c.h.b16 %v219
    %v522 = vunpack.c.l.b16 %v220
    %v523 = vunpack.c.h.b16 %v220
    %v524 = vunpack.c.l.b16 %v221
    %v525 = vunpack.c.h.b16 %v221
    %v526 = vunpack.c.l.b16 %v222
    %v527 = vunpack.c.h.b16 %v222
    %v528 = vunpack.c.l.b16 %v223
    %v529 = vunpack.c.h.b16 %v223
    %v530 = vunpack.c.l.b16 %v224
    %v531 = vunpack.c.h.b16 %v224
    %v532 = vunpack.c.l.b16 %v225
    %v533 = vunpack.c.h.b16 %v225
    %v534 = vunpack.c.l.b16 %v226
    %v535 = vunpack.c.h.b16 %v226
    %v536 = vunpack.c.l.b16 %v227
    %v537 = vunpack.c.h.b16 %v227
    %v538 = vunpack.c.l.b16 %v228
    %v539 = vunpack.c.h.b16 %v228
    %v540 = vunpack.c.l.b16 %v229
    %v541 = vunpack.c.h.b16 %v229
    %v542 = vunpack.c.l.b16 %v230
    %v543 = vunpack.c.h.b16 %v230
    %v544 = vunpack.c.l.b16 %v231
    %v545 = vunpack.c.h.b16 %v231
    %v546 = vunpack.c.l.b16 %v232
    %v547 = vunpack.c.h.b16 %v232
    %v548 = vunpack.c.l.b16 %v233
    %v549 = vunpack.c.h.b16 %v233
    %v550 = vunpack.c.l.b16 %v234
    %v551 = vunpack.c.h.b16 %v234
    %v552 = vunpack.c.l.b16 %v235
    %v553 = vunpack.c.h.b16 %v235
    %v554 = vunpack.c.l.b16 %v236
    %v555 = vunpack.c.h.b16 %v236
    %v556 = vunpack.c.l.b16 %v237
    %v557 = vunpack.c.h.b16 %v237
    %v558 = vunpack.c.l.b16 %v238
    %v559 = vunpack.c.h.b16 %v238
    %v560 = vunpack.c.l.b16 %v239
    %v561 = vunpack.c.h.b16 %v239
    %v562 = vunpack.c.l.b16 %v240
    %v563 = vunpack.c.h.b16 %v240
    %v564 = vunpack.c.l.b16 %v241
    %v565 = vunpack.c.h.b16 %v241
    %v566 = vunpack.c.l.b16 %v242
    %v567 = vunpack.c.h.b16 %v242
    %v568 = vunpack.c.l.b16 %v243
    %v569 = vunpack.c.h.b16 %v243
    %v570 = vunpack.c.l.b16 %v244
    %v571 = vunpack.c.h.b16 %v244
    %v572 = vunpack.c.l.b16 %v245
    %v573 = vunpack.c.h.b16 %v245
    %v574 = vunpack.c.l.b16 %v246
    %v575 = vunpack.c.h.b16 %v246
    %v576 = vunpack.c.l.b16 %v247
    %v577 = vunpack.c.h.b16 %v247
    %v578 = vunpack.c.l.b16 %v248
    %v579 = vunpack.c.h.b16 %v248
    %v580 = vunpack.c.l.b16 %v249
    %v581 = vunpack.c.h.b16 %v249
    %v582 = vunpack.c.l.b16 %v250
    %v583 = vunpack.c.h.b16 %v250
    %v584 = vunpack.c.l.b16 %v251
    %v585 = vunpack.c.h.b16 %v251
    %v586 = vunpack.c.l.b16 %v252
    %v587 = vunpack.c.h.b16 %v252
    %v588 = vunpack.c.l.b16 %v253
    %v589 = vunpack.c.h.b16 %v253
    %v590 = vunpack.c.l.b16 %v254
    %v591 = vunpack.c.h.b16 %v254
    %v592 = vunpack.c.l.b16 %v255
    %v593 = vunpack.c.h.b16 %v255
    %v594 = vunpack.c.l.b16 %v256
    %v595 = vunpack.c.h.b16 %v256
    %v596 = vunpack.c.l.b16 %v257
    %v597 = vunpack.c.h.b16 %v257
    %v598 = vunpack.c.l.b16 %v258
    %v599 = vunpack.c.h.b16 %v258
    %v600 = vunpack.c.l.b16 %v259
    %v601 = vunpack.c.h.b16 %v259
    %v602 = vunpack.c.l.b16 %v260
    %v603 = vunpack.c.h.b16 %v260
    %v604 = vunpack.c.l.b16 %v261
    %v605 = vunpack.c.h.b16 %v261
    %v606 = vunpack.c.l.b16 %v262
    %v607 = vunpack.c.h.b16 %v262
    %v608 = vunpack.c.l.b16 %v263
    %v609 = vunpack.c.h.b16 %v263
    %v610 = vunpack.c.l.b16 %v264
    %v611 = vunpack.c.h.b16 %v264
    %v612 = vunpack.c.l.b16 %v265
    %v613 = vunpack.c.h.b16 %v265
    %v614 = vunpack.c.l.b16 %v266
    %v615 = vunpack.c.h.b16 %v266
    %v616 = vunpack.c.l.b16 %v267
    %v617 = vunpack.c.h.b16 %v267
    %v618 = vunpack.c.l.b16 %v268
    %v619 = vunpack.c.h.b16 %v268
    %v620 = vunpack.c.l.b16 %v269
    %v621 = vunpack.c.h.b16 %v269
    %v622 = vunpack.c.l.b16 %v270
    %v623 = vunpack.c.h.b16 %v270
    %v624 = vunpack.c.l.b16 %v271
    %v625 = vunpack.c.h.b16 %v271
    %v626 = vunpack.c.l.b16 %v272
    %v627 = vunpack.c.h.b16 %v272
    %v628 = vunpack.c.l.b16 %v273
    %v629 = vunpack.c.h.b16 %v273
    %v630 = vunpack.c.l.b16 %v274
    %v631 = vunpack.c.h.b16 %v274
    %v632 = vunpack.c.l.b16 %v275
    %v633 = vunpack.c.h.b16 %v275
    %v634 = vunpack.c.l.b16 %v276
    %v635 = vunpack.c.h.b16 %v276
    %v636 = vunpack.c.l.b16 %v277
    %v637 = vunpack.c.h.b16 %v277
    %v638 = vunpack.c.l.b16 %v278
    %v639 = vunpack.c.h.b16 %v278
    %v640 = vunpack.c.l.b16 %v279
    %v641 = vunpack.c.h.b16 %v279
    %v642 = vunpack.c.l.b16 %v280
    %v643 = vunpack.c.h.b16 %v280
    %v644 = vunpack.c.l.b16 %v281
    %v645 = vunpack.c.h.b16 %v281
    %v646 = vunpack.c.l.b16 %v282
    %v647 = vunpack.c.h.b16 %v282
    %v648 = vunpack.c.l.b16 %v283
    %v649 = vunpack.c.h.b16 %v283
    %v650 = vunpack.c.l.b16 %v284
    %v651 = vunpack.c.h.b16 %v284
    %v652 = vunpack.c.l.b16 %v285
    %v653 = vunpack.c.h.b16 %v285
    %v654 = vunpack.c.l.b16 %v286
    %v655 = vunpack.c.h.b16 %v286
    %v656 = vunpack.c.l.b16 %v287
    %v657 = vunpack.c.h.b16 %v287
    %v658 = vunpack.c.l.b16 %v288
    %v659 = vunpack.c.h.b16 %v288
    %v660 = vunpack.c.l.b16 %v289
    %v661 = vunpack.c.h.b16 %v289
    %v662 = vunpack.c.l.b16 %v290
    %v663 = vunpack.c.h.b16 %v290
    %v664 = vunpack.c.l.b16 %v291
    %v665 = vunpack.c.h.b16 %v291
    %v666 = vunpack.c.l.b16 %v292
    %v667 = vunpack.c.h.b16 %v292
    %v668 = vunpack.c.l.b16 %v293
    %v669 = vunpack.c.h.b16 %v293
    %v670 = vunpack.c.l.b16 %v294
    %v671 = vunpack.c.h.b16 %v294
    %v672 = vunpack.c.l.b16 %v295
    %v673 = vunpack.c.h.b16 %v295
    %v674 = vunpack.c.l.b16 %v296
    %v675 = vunpack.c.h.b16 %v296
    %v676 = vunpack.c.l.b16 %v297
    %v677 = vunpack.c.h.b16 %v297
    %v678 = vunpack.c.l.b16 %v298
    %v679 = vunpack.c.h.b16 %v298
    %v680 = vunpack.c.l.b16 %v299
    %v681 = vunpack.c.h.b16 %v299
    %v682 = vunpack.c.l.b16 %v300
    %v683 = vunpack.c.h.b16 %v300
    %v684 = vunpack.c.l.b16 %v301
    %v685 = vunpack.c.h.b16 %v301
    %v686 = vunpack.c.l.b16 %v302
    %v687 = vunpack.c.h.b16 %v302
    %v688 = vunpack.c.l.b16 %v303
    %v689 = vunpack.c.h.b16 %v303
    %v690 = vunpack.c.l.b16 %v304
    %v691 = vunpack.c.h.b16 %v304
    %v692 = vunpack.c.l.b16 %v305
    %v693 = vunpack.c.h.b16 %v305
    %v694 = vunpack.c.l.b16 %v306
    %v695 = vunpack.c.h.b16 %v306
    %v696 = vunpack.c.l.b16 %v307
    %v697 = vunpack.c.h.b16 %v307
    %v698 = vunpack.c.l.b16 %v308
    %v699 = vunpack.c.h.b16 %v308
    %v700 = vunpack.c.l.b16 %v309
    %v701 = vunpack.c.h.b16 %v309
    %v702 = vunpack.c.l.b16 %v310
    %v703 = vunpack.c.h.b16 %v310
    %v704 = vunpack.c.l.b16 %v311
    %v705 = vunpack.c.h.b16 %v311
    %v706 = vunpack.c.l.b16 %v312
    %v707 = vunpack.c.h.b16 %v312
    %v708 = vunpack.c.l.b16 %v313
    %v709 = vunpack.c.h.b16 %v313
    %v710 = vunpack.c.l.b16 %v314
    %v711 = vunpack.c.h.b16 %v314
    %v712 = vunpack.c.l.b16 %v315
    %v713 = vunpack.c.h.b16 %v315
    %v714 = vunpack.c.l.b16 %v316
    %v715 = vunpack.c.h.b16 %v316
    %v716 = vunpack.c.l.b16 %v317
    %v717 = vunpack.c.h.b16 %v317
    %v718 = vunpack.c.l.b16 %v318
    %v719 = vunpack.c.h.b16 %v318
    %v720 = vunpack.c.l.b16 %v319
    %v721 = vunpack.c.h.b16 %v319
    %v722 = vunpack.c.l.b16 %v320
    %v723 = vunpack.c.h.b16 %v320
    %v724 = vunpack.c.l.b16 %v321
    %v725 = vunpack.c.h.b16 %v321
    %v726 = vunpack.c.l.b16 %v322
    %v727 = vunpack.c.h.b16 %v322
    %v728 = vunpack.c.l.b16 %v323
    %v729 = vunpack.c.h.b16 %v323
    %v730 = vpack.c.b16 %v478, %v474
    %v731 = vpack.c.b16 %v479, %v475
    %v732 = vpack.c.b16 %v480, %v476
    %v733 = vpack.c.b16 %v481, %v477
    %v734 = vpack.c.b16 %v486, %v482
    %v735 = vpack.c.b16 %v487, %v483
    %v736 = vpack.c.b16 %v488, %v484
    %v737 = vpack.c.b16 %v489, %v485
    %v738 = vpack.c.b16 %v494, %v490
    %v739 = vpack.c.b16 %v495, %v491
    %v740 = vpack.c.b16 %v496, %v492
    %v741 = vpack.c.b16 %v497, %v493
    %v742 = vpack.c.b16 %v502, %v498
    %v743 = vpack.c.b16 %v503, %v499
    %v744 = vpack.c.b16 %v504, %v500
    %v745 = vpack.c.b16 %v505, %v501
    %v746 = vpack.c.b16 %v510, %v506
    %v747 = vpack.c.b16 %v511, %v507
    %v748 = vpack.c.b16 %v512, %v508
    %v749 = vpack.c.b16 %v513, %v509
    %v750 = vpack.c.b16 %v518, %v514
    %v751 = vpack.c.b16 %v519, %v515
    %v752 = vpack.c.b16 %v520, %v516
    %v753 = vpack.c.b16 %v521, %v517
    %v754 = vpack.c.b16 %v526, %v522
    %v755 = vpack.c.b16 %v527, %v523
    %v756 = vpack.c.b16 %v528, %v524
    %v757 = vpack.c.b16 %v529, %v525
    %v758 = vpack.c.b16 %v534, %v530
    %v759 = vpack.c.b16 %v535, %v531
    %v760 = vpack.c.b16 %v536, %v532
    %v761 = vpack.c.b16 %v537, %v533
    %v762 = vpack.c.b16 %v542, %v538
    %v763 = vpack.c.b16 %v543, %v539
    %v764 = vpack.c.b16 %v544, %v540
    %v765 = vpack.c.b16 %v545, %v541
    %v766 = vpack.c.b16 %v550, %v546
    %v767 = vpack.c.b16 %v551, %v547
    %v768 = vpack.c.b16 %v552, %v548
    %v769 = vpack.c.b16 %v553, %v549
    %v770 = vpack.c.b16 %v558, %v554
    %v771 = vpack.c.b16 %v559, %v555
    %v772 = vpack.c.b16 %v560, %v556
    %v773 = vpack.c.b16 %v561, %v557
    %v774 = vpack.c.b16 %v566, %v562
    %v775 = vpack.c.b16 %v567, %v563
    %v776 = vpack.c.b16 %v568, %v564
    %v777 = vpack.c.b16 %v569, %v565
    %v778 = vpack.c.b16 %v574, %v570
    %v779 = vpack.c.b16 %v575, %v571
    %v780 = vpack.c.b16 %v576, %v572
    %v781 = vpack.c.b16 %v577, %v573
    %v782 = vpack.c.b16 %v582, %v578
    %v783 = vpack.c.b16 %v583, %v579
    %v784 = vpack.c.b16 %v584, %v580
    %v785 = vpack.c.b16 %v585, %v581
    %v786 = vpack.c.b16 %v590, %v586
    %v787 = vpack.c.b16 %v591, %v587
    %v788 = vpack.c.b16 %v592, %v588
    %v789 = vpack.c.b16 %v593, %v589
    %v790 = vpack.c.b16 %v598, %v594
    %v791 = vpack.c.b16 %v599, %v595
    %v792 = vpack.c.b16 %v600, %v596
    %v793 = vpack.c.b16 %v601, %v597
    %v794 = vpack.c.b16 %v606, %v602
    %v795 = vpack.c.b16 %v607, %v603
    %v796 = vpack.c.b16 %v608, %v604
    %v797 = vpack.c.b16 %v609, %v605
    %v798 = vpack.c.b16 %v614, %v610
    %v799 = vpack.c.b16 %v615, %v611
    %v800 = vpack.c.b16 %v616, %v612
    %v801 = vpack.c.b16 %v617, %v613
    %v802 = vpack.c.b16 %v622, %v618
    %v803 = vpack.c.b16 %v623, %v619
    %v804 = vpack.c.b16 %v624, %v620
    %v805 = vpack.c.b16 %v625, %v621
    %v806 = vpack.c.b16 %v630, %v626
    %v807 = vpack.c.b16 %v631, %v627
    %v808 = vpack.c.b16 %v632, %v628
    %v809 = vpack.c.b16 %v633, %v629
    %v810 = vpack.c.b16 %v638, %v634
    %v811 = vpack.c.b16 %v639, %v635
    %v812 = vpack.c.b16 %v640, %v636
    %v813 = vpack.c.b16 %v641, %v637
    %v814 = vpack.c.b16 %v646, %v642
    %v815 = vpack.c.b16 %v647, %v643
    %v816 = vpack.c.b16 %v648, %v644
    %v817 = vpack.c.b16 %v649, %v645
    %v818 = vpack.c.b16 %v654, %v650
    %v819 = vpack.c.b16 %v655, %v651
    %v820 = vpack.c.b16 %v656, %v652
    %v821 = vpack.c.b16 %v657, %v653
    %v822 = vpack.c.b16 %v662, %v658
    %v823 = vpack.c.b16 %v663, %v659
    %v824 = vpack.c.b16 %v664, %v660
    %v825 = vpack.c.b16 %v665, %v661
    %v826 = vpack.c.b16 %v670, %v666
    %v827 = vpack.c.b16 %v671, %v667
    %v828 = vpack.c.b16 %v672, %v668
    %v829 = vpack.c.b16 %v673, %v669
    %v830 = vpack.c.b16 %v678, %v674
    %v831 = vpack.c.b16 %v679, %v675
    %v832 = vpack.c.b16 %v680, %v676
    %v833 = vpack.c.b16 %v681, %v677
    %v834 = vpack.c.b16 %v686, %v682
    %v835 = vpack.c.b16 %v687, %v683
    %v836 = vpack.c.b16 %v688, %v684
    %v837 = vpack.c.b16 %v689, %v685
    %v838 = vpack.c.b16 %v694, %v690
    %v839 = vpack.c.b16 %v695, %v691
    %v840 = vpack.c.b16 %v696, %v692
    %v841 = vpack.c.b16 %v697, %v693
    %v842 = vpack.c.b16 %v702, %v698
    %v843 = vpack.c.b16 %v703, %v699
    %v844 = vpack.c.b16 %v704, %v700
    %v845 = vpack.c.b16 %v705, %v701
    %v846 = vpack.c.b16 %v710, %v706
    %v847 = vpack.c.b16 %v711, %v707
    %v848 = vpack.c.b16 %v712, %v708
    %v849 = vpack.c.b16 %v713, %v709
    %v850 = vpack.c.b16 %v718, %v714
    %v851 = vpack.c.b16 %v719, %v715
    %v852 = vpack.c.b16 %v720, %v716
    %v853 = vpack.c.b16 %v721, %v717
    %v854 = vpack.c.b16 %v726, %v722
    %v855 = vpack.c.b16 %v727, %v723
    %v856 = vpack.c.b16 %v728, %v724
    %v857 = vpack.c.b16 %v729, %v725
    %986 = vmatprep.subr.bf16.mxu0 %v759
    %987 = vmatpush1.bf16.msra.mxu0 %v758
    %988 = vmatprep.subr.bf16.mxu0 %v755
    %989 = vmatpush1.bf16.msra.mxu0 %v754
    %990 = vmatprep.subr.bf16.mxu0 %v751
    %991 = vmatpush1.bf16.msra.mxu0 %v750
    %992 = vmatprep.subr.bf16.mxu0 %v747
    %993 = vmatpush1.bf16.msra.mxu0 %v746
    %994 = vmatprep.subr.bf16.mxu0 %v743
    %995 = vmatpush1.bf16.msra.mxu0 %v742
    %996 = vmatprep.subr.bf16.mxu0 %v739
    %997 = vmatpush1.bf16.msra.mxu0 %v738
    %998 = vmatprep.subr.bf16.mxu0 %v735
    %999 = vmatpush1.bf16.msra.mxu0 %v734
    %1000 = vmatprep.subr.bf16.mxu0 %v731
    %1001 = vmatpush1.bf16.msra.mxu0 %v730
    %1002 = vmatprep.subr.bf16.mxu0 %v791
    %1003 = vmatpush2.bf16.msra.mxu0 %v790
    %1004 = vmatprep.subr.bf16.mxu0 %v787
    %1005 = vmatpush2.bf16.msra.mxu0 %v786
    %1006 = vmatprep.subr.bf16.mxu0 %v783
    %1007 = vmatpush2.bf16.msra.mxu0 %v782
    %1008 = vmatprep.subr.bf16.mxu0 %v779
    %1009 = vmatpush2.bf16.msra.mxu0 %v778
    %1010 = vmatprep.subr.bf16.mxu0 %v775
    %1011 = vmatpush2.bf16.msra.mxu0 %v774
    %1012 = vmatprep.subr.bf16.mxu0 %v771
    %1013 = vmatpush2.bf16.msra.mxu0 %v770
    %1014 = vmatprep.subr.bf16.mxu0 %v767
    %1015 = vmatpush2.bf16.msra.mxu0 %v766
    %1016 = vmatprep.subr.bf16.mxu0 %v763
    %1017 = vmatpush2.bf16.msra.mxu0 %v762
    %1018 = vmatprep.mubr.bf16.mxu0 %v193
    %1019 = vmatmul.mubr.bf16.gmra.mxu0 %v192
    %v1020 = vpop.f32.mrf.mxu0
    %v1021 = vadd.f32 %v329, %v1020
    %v1022 = vpop.f32.mrf.mxu0
    %v1023 = vadd.f32 %v333, %v1022
    %v1024 = vpop.f32.mrf.mxu0
    %v1025 = vadd.f32 %v329, %v1024
    %v1026 = vpop.f32.mrf.mxu0
    %v1027 = vadd.f32 %v333, %v1026
    %1028 = vdwg.mxu0
    %1029 = vmatprep.subr.bf16.mxu0 %v823
    %1030 = vmatpush1.bf16.msra.mxu0 %v822
    %1031 = vmatprep.subr.bf16.mxu0 %v819
    %1032 = vmatpush1.bf16.msra.mxu0 %v818
    %1033 = vmatprep.subr.bf16.mxu0 %v815
    %1034 = vmatpush1.bf16.msra.mxu0 %v814
    %1035 = vmatprep.subr.bf16.mxu0 %v811
    %1036 = vmatpush1.bf16.msra.mxu0 %v810
    %1037 = vmatprep.subr.bf16.mxu0 %v807
    %1038 = vmatpush1.bf16.msra.mxu0 %v806
    %1039 = vmatprep.subr.bf16.mxu0 %v803
    %1040 = vmatpush1.bf16.msra.mxu0 %v802
    %1041 = vmatprep.subr.bf16.mxu0 %v799
    %1042 = vmatpush1.bf16.msra.mxu0 %v798
    %1043 = vmatprep.subr.bf16.mxu0 %v795
    %1044 = vmatpush1.bf16.msra.mxu0 %v794
    %1045 = vmatprep.subr.bf16.mxu0 %v855
    %1046 = vmatpush2.bf16.msra.mxu0 %v854
    %1047 = vmatprep.subr.bf16.mxu0 %v851
    %1048 = vmatpush2.bf16.msra.mxu0 %v850
    %1049 = vmatprep.subr.bf16.mxu0 %v847
    %1050 = vmatpush2.bf16.msra.mxu0 %v846
    %1051 = vmatprep.subr.bf16.mxu0 %v843
    %1052 = vmatpush2.bf16.msra.mxu0 %v842
    %1053 = vmatprep.subr.bf16.mxu0 %v839
    %1054 = vmatpush2.bf16.msra.mxu0 %v838
    %1055 = vmatprep.subr.bf16.mxu0 %v835
    %1056 = vmatpush2.bf16.msra.mxu0 %v834
    %1057 = vmatprep.subr.bf16.mxu0 %v831
    %1058 = vmatpush2.bf16.msra.mxu0 %v830
    %1059 = vmatprep.subr.bf16.mxu0 %v827
    %1060 = vmatpush2.bf16.msra.mxu0 %v826
    %1061 = vmatprep.mubr.bf16.mxu0 %v195
    %1062 = vmatmul.mubr.bf16.gmra.mxu0 %v194
    %v1063 = vpop.f32.mrf.mxu0
    %v1064 = vadd.f32 %v1021, %v1063
    %v1065 = vpop.f32.mrf.mxu0
    %v1066 = vadd.f32 %v1023, %v1065
    %v1067 = vpop.f32.mrf.mxu0
    %v1068 = vadd.f32 %v1025, %v1067
    %v1069 = vpop.f32.mrf.mxu0
    %v1070 = vadd.f32 %v1027, %v1069
    %1071 = vdwg.mxu0
    %1072 = vmatprep.subr.bf16.mxu0 %v761
    %1073 = vmatpush1.bf16.msra.mxu0 %v760
    %1074 = vmatprep.subr.bf16.mxu0 %v757
    %1075 = vmatpush1.bf16.msra.mxu0 %v756
    %1076 = vmatprep.subr.bf16.mxu0 %v753
    %1077 = vmatpush1.bf16.msra.mxu0 %v752
    %1078 = vmatprep.subr.bf16.mxu0 %v749
    %1079 = vmatpush1.bf16.msra.mxu0 %v748
    %1080 = vmatprep.subr.bf16.mxu0 %v745
    %1081 = vmatpush1.bf16.msra.mxu0 %v744
    %1082 = vmatprep.subr.bf16.mxu0 %v741
    %1083 = vmatpush1.bf16.msra.mxu0 %v740
    %1084 = vmatprep.subr.bf16.mxu0 %v737
    %1085 = vmatpush1.bf16.msra.mxu0 %v736
    %1086 = vmatprep.subr.bf16.mxu0 %v733
    %1087 = vmatpush1.bf16.msra.mxu0 %v732
    %1088 = vmatprep.subr.bf16.mxu0 %v793
    %1089 = vmatpush2.bf16.msra.mxu0 %v792
    %1090 = vmatprep.subr.bf16.mxu0 %v789
    %1091 = vmatpush2.bf16.msra.mxu0 %v788
    %1092 = vmatprep.subr.bf16.mxu0 %v785
    %1093 = vmatpush2.bf16.msra.mxu0 %v784
    %1094 = vmatprep.subr.bf16.mxu0 %v781
    %1095 = vmatpush2.bf16.msra.mxu0 %v780
    %1096 = vmatprep.subr.bf16.mxu0 %v777
    %1097 = vmatpush2.bf16.msra.mxu0 %v776
    %1098 = vmatprep.subr.bf16.mxu0 %v773
    %1099 = vmatpush2.bf16.msra.mxu0 %v772
    %1100 = vmatprep.subr.bf16.mxu0 %v769
    %1101 = vmatpush2.bf16.msra.mxu0 %v768
    %1102 = vmatprep.subr.bf16.mxu0 %v765
    %1103 = vmatpush2.bf16.msra.mxu0 %v764
    %1104 = vmatprep.mubr.bf16.mxu0 %v193
    %1105 = vmatmul.mubr.bf16.gmra.mxu0 %v192
    %v1106 = vpop.f32.mrf.mxu0
    %v1107 = vadd.f32 %v337, %v1106
    %v1108 = vpop.f32.mrf.mxu0
    %v1109 = vadd.f32 %v341, %v1108
    %v1110 = vpop.f32.mrf.mxu0
    %v1111 = vadd.f32 %v337, %v1110
    %v1112 = vpop.f32.mrf.mxu0
    %v1113 = vadd.f32 %v341, %v1112
    %1114 = vdwg.mxu0
    %1115 = vmatprep.subr.bf16.mxu0 %v825
    %1116 = vmatpush1.bf16.msra.mxu0 %v824
    %1117 = vmatprep.subr.bf16.mxu0 %v821
    %1118 = vmatpush1.bf16.msra.mxu0 %v820
    %1119 = vmatprep.subr.bf16.mxu0 %v817
    %1120 = vmatpush1.bf16.msra.mxu0 %v816
    %1121 = vmatprep.subr.bf16.mxu0 %v813
    %1122 = vmatpush1.bf16.msra.mxu0 %v812
    %1123 = vmatprep.subr.bf16.mxu0 %v809
    %1124 = vmatpush1.bf16.msra.mxu0 %v808
    %1125 = vmatprep.subr.bf16.mxu0 %v805
    %1126 = vmatpush1.bf16.msra.mxu0 %v804
    %1127 = vmatprep.subr.bf16.mxu0 %v801
    %1128 = vmatpush1.bf16.msra.mxu0 %v800
    %1129 = vmatprep.subr.bf16.mxu0 %v797
    %1130 = vmatpush1.bf16.msra.mxu0 %v796
    %1131 = vmatprep.subr.bf16.mxu0 %v857
    %1132 = vmatpush2.bf16.msra.mxu0 %v856
    %1133 = vmatprep.subr.bf16.mxu0 %v853
    %1134 = vmatpush2.bf16.msra.mxu0 %v852
    %1135 = vmatprep.subr.bf16.mxu0 %v849
    %1136 = vmatpush2.bf16.msra.mxu0 %v848
    %1137 = vmatprep.subr.bf16.mxu0 %v845
    %1138 = vmatpush2.bf16.msra.mxu0 %v844
    %1139 = vmatprep.subr.bf16.mxu0 %v841
    %1140 = vmatpush2.bf16.msra.mxu0 %v840
    %1141 = vmatprep.subr.bf16.mxu0 %v837
    %1142 = vmatpush2.bf16.msra.mxu0 %v836
    %1143 = vmatprep.subr.bf16.mxu0 %v833
    %1144 = vmatpush2.bf16.msra.mxu0 %v832
    %1145 = vmatprep.subr.bf16.mxu0 %v829
    %1146 = vmatpush2.bf16.msra.mxu0 %v828
    %1147 = vmatprep.mubr.bf16.mxu0 %v195
    %1148 = vmatmul.mubr.bf16.gmra.mxu0 %v194
    %v1149 = vpop.f32.mrf.mxu0
    %v1150 = vadd.f32 %v1107, %v1149
    %v1151 = vpop.f32.mrf.mxu0
    %v1152 = vadd.f32 %v1109, %v1151
    %v1153 = vpop.f32.mrf.mxu0
    %v1154 = vadd.f32 %v1111, %v1153
    %v1155 = vpop.f32.mrf.mxu0
    %v1156 = vadd.f32 %v1113, %v1155
    %1157 = vdwg.mxu0
    %v1158 = vpack.c.bf16 %v1068, %v1064
    %v1159 = vpack.c.bf16 %v1070, %v1066
    %v1160 = vpack.c.bf16 %v1154, %v1150
    %v1161 = vpack.c.bf16 %v1156, %v1152
    %v1166 = vunpack.c.l.b16 %v1158
    %v1167 = vunpack.c.l.b16 %v1159
    %v1168 = vunpack.c.l.b16 %v1160
    %v1169 = vunpack.c.l.b16 %v1161
    %v1170 = vunpack.c.h.b16 %v1158
    %v1171 = vunpack.c.h.b16 %v1159
    %v1172 = vunpack.c.h.b16 %v1160
    %v1173 = vunpack.c.h.b16 %v1161
    %v1174 = vpack.c.b16 %v1167, %v1166
    %v1175 = vpack.c.b16 %v1169, %v1168
    %v1176 = vpack.c.b16 %v1171, %v1170
    %v1177 = vpack.c.b16 %v1173, %v1172
    %1182 = vst [vmem:[#allocation7] sm:$0xff] %v1174
    %1183 = vst [vmem:[#allocation7 + $0x8] sm:$0xff] %v1175
    %1184 = vst [vmem:[#allocation7 + $0x10] sm:$0xff] %v1176
    %1185 = vst [vmem:[#allocation7 + $0x18] sm:$0xff] %v1177
    %v1186 = vadd.f32 %v1064, %v1068
    %v1187 = vrot.slane %v1186, 4
    %v1188 = vadd.f32 %v1186, %v1187
    %v1189 = vrot.slane %v1188, 2
    %v1190 = vadd.f32 %v1188, %v1189
    %v1191 = vrot.slane %v1190, 1
    %v1192 = vadd.f32 %v1190, %v1191
    %v1193 = vadd.f32 %v1066, %v1070
    %v1194 = vrot.slane %v1193, 4
    %v1195 = vadd.f32 %v1193, %v1194
    %v1196 = vrot.slane %v1195, 2
    %v1197 = vadd.f32 %v1195, %v1196
    %v1198 = vrot.slane %v1197, 1
    %v1199 = vadd.f32 %v1197, %v1198
    %v1200 = vadd.f32 %v1150, %v1154
    %v1201 = vrot.slane %v1200, 4
    %v1202 = vadd.f32 %v1200, %v1201
    %v1203 = vrot.slane %v1202, 2
    %v1204 = vadd.f32 %v1202, %v1203
    %v1205 = vrot.slane %v1204, 1
    %v1206 = vadd.f32 %v1204, %v1205
    %v1207 = vadd.f32 %v1152, %v1156
    %v1208 = vrot.slane %v1207, 4
    %v1209 = vadd.f32 %v1207, %v1208
    %v1210 = vrot.slane %v1209, 2
    %v1211 = vadd.f32 %v1209, %v1210
    %v1212 = vrot.slane %v1211, 1
    %v1213 = vadd.f32 %v1211, %v1212
    %v1218 = vcombine.low %v1192, %v1199
    %v1219 = vcombine.low %v1206, %v1213
    %v1221 = vunpack.c.l.s4 1966171168
    %v1222 = vunpack.c.0.s8 %v1221
    %v1223 = vlaneseq
    %v1224 = vshrl.u32 %v1223, 7
    %v1225 = vsub.s32 %v1222, %v1224
    %v1226 = vrot.slane %v1218, %v1225
    %v1228 = vunpack.c.l.s4 1966171168
    %v1229 = vunpack.c.0.s8 %v1228
    %v1230 = vlaneseq
    %v1231 = vshrl.u32 %v1230, 7
    %v1232 = vsub.s32 %v1229, %v1231
    %v1233 = vrot.slane %v1219, %v1232
    %v1234 = vcombine.low %v1226, %v1233
    %v1236 = vunpack.c.l.s4 1966171168
    %v1237 = vunpack.c.0.s8 %v1236
    %v1238 = vlaneseq
    %v1239 = vshrl.u32 %v1238, 7
    %v1240 = vsub.s32 %v1237, %v1239
    %v1241 = vrot.slane %v1234, %v1240
    %v1243 = vlaneseq
    %vm1244 = vcmp.ge.s32.totalorder %v1243, 0
    %vm1245 = vcmp.lt.s32.totalorder %v1243, 512
    %vm1246 = vmand %vm1244, %vm1245
    %1247 = vst.msk [vmem:[#allocation8] ss:$2 sm:$0xf] %vm1246, %v1241
    %v1248 = vmul.f32 %v1064, %v1064
    %v1249 = vmul.f32 %v1066, %v1066
    %v1250 = vmul.f32 %v1150, %v1150
    %v1251 = vmul.f32 %v1152, %v1152
    %v1252 = vmul.f32 %v1068, %v1068
    %v1253 = vmul.f32 %v1070, %v1070
    %v1254 = vmul.f32 %v1154, %v1154
    %v1255 = vmul.f32 %v1156, %v1156
    %v1256 = vadd.f32 %v1248, %v1252
    %v1257 = vrot.slane %v1256, 4
    %v1258 = vadd.f32 %v1256, %v1257
    %v1259 = vrot.slane %v1258, 2
    %v1260 = vadd.f32 %v1258, %v1259
    %v1261 = vrot.slane %v1260, 1
    %v1262 = vadd.f32 %v1260, %v1261
    %v1263 = vadd.f32 %v1249, %v1253
    %v1264 = vrot.slane %v1263, 4
    %v1265 = vadd.f32 %v1263, %v1264
    %v1266 = vrot.slane %v1265, 2
    %v1267 = vadd.f32 %v1265, %v1266
    %v1268 = vrot.slane %v1267, 1
    %v1269 = vadd.f32 %v1267, %v1268
    %v1270 = vadd.f32 %v1250, %v1254
    %v1271 = vrot.slane %v1270, 4
    %v1272 = vadd.f32 %v1270, %v1271
    %v1273 = vrot.slane %v1272, 2
    %v1274 = vadd.f32 %v1272, %v1273
    %v1275 = vrot.slane %v1274, 1
    %v1276 = vadd.f32 %v1274, %v1275
    %v1277 = vadd.f32 %v1251, %v1255
    %v1278 = vrot.slane %v1277, 4
    %v1279 = vadd.f32 %v1277, %v1278
    %v1280 = vrot.slane %v1279, 2
    %v1281 = vadd.f32 %v1279, %v1280
    %v1282 = vrot.slane %v1281, 1
    %v1283 = vadd.f32 %v1281, %v1282
    %v1288 = vcombine.low %v1262, %v1269
    %v1289 = vcombine.low %v1276, %v1283
    %v1291 = vunpack.c.l.s4 1966171168
    %v1292 = vunpack.c.0.s8 %v1291
    %v1293 = vlaneseq
    %v1294 = vshrl.u32 %v1293, 7
    %v1295 = vsub.s32 %v1292, %v1294
    %v1296 = vrot.slane %v1288, %v1295
    %v1298 = vunpack.c.l.s4 1966171168
    %v1299 = vunpack.c.0.s8 %v1298
    %v1300 = vlaneseq
    %v1301 = vshrl.u32 %v1300, 7
    %v1302 = vsub.s32 %v1299, %v1301
    %v1303 = vrot.slane %v1289, %v1302
    %v1304 = vcombine.low %v1296, %v1303
    %v1306 = vunpack.c.l.s4 1966171168
    %v1307 = vunpack.c.0.s8 %v1306
    %v1308 = vlaneseq
    %v1309 = vshrl.u32 %v1308, 7
    %v1310 = vsub.s32 %v1307, %v1309
    %v1311 = vrot.slane %v1304, %v1310
    %s1313 = scalar_lea.vmem [#allocation8], 1
    %1314 = vst.msk [vmem:[%s1313] ss:$2 sm:$0xf] %vm1246, %v1311
    // Predicated region
    $region26: #{tpu_custom_call.1} parent=1 // pred_check
      _
    $region27: #{tpu_custom_call.1} parent=1 // pred_check_branch
      %1316 = sbr.rel (0) target = $region29
    $region28: #{tpu_custom_call.1} parent=1 // pred_region
      %s1318 = ssub.s32 512, 512
      %1319 = vsyncadd [#allocation4], %s1318
      %s1320 = sshll.u32 [#allocation7], 4
      %s1321 = int_to_ptr.vmem [resolvable:$true] %s1320
      %1326 = dma.vmem_to_hbm [thread:$0]  %s1321, 512, %s4, [#allocation4], 256, 256, 16
    $region29: #{tpu_custom_call.1} parent=1 // pred_fallthru
      _
    // Predicated region
    $region30: #{tpu_custom_call.1} parent=1 // pred_check
      _
    $region31: #{tpu_custom_call.1} parent=1 // pred_check_branch
      %1328 = sbr.rel (0) target = $region33
    $region32: #{tpu_custom_call.1} parent=1 // pred_region
      %s1330 = ssub.s32 128, 128
      %1331 = vsyncadd [#allocation9], %s1330
      %s1333 = sshll.u32 [#allocation8], 4
      %s1334 = int_to_ptr.vmem [resolvable:$true] %s1333
      %1336 = dma.vmem_to_hbm [thread:$0]  %s1334, 128, %s5, [#allocation9]
    $region33: #{tpu_custom_call.1} parent=1 // pred_fallthru
      _
    // Predicated region
    $region34: #{tpu_custom_call.1} parent=1 // pred_check
      _
    $region35: #{tpu_custom_call.1} parent=1 // pred_check_branch
      %1338 = sbr.rel (0) target = $region37
    $region36: #{tpu_custom_call.1} parent=1 // pred_region
      %1339 = dma.done [#allocation4], 512
    $region37: #{tpu_custom_call.1} parent=1 // pred_fallthru
      _
    // Predicated region
    $region38: #{tpu_custom_call.1} parent=1 // pred_check
      _
    $region39: #{tpu_custom_call.1} parent=1 // pred_check_branch
      %1341 = sbr.rel (0) target = $region41
    $region40: #{tpu_custom_call.1} parent=1 // pred_region
      %1342 = dma.done [#allocation9], 128
    $region41: #{tpu_custom_call.1} parent=1 // pred_fallthru
      _
    %1343 = vsyncpa [#allocation3], 1
    %1344 = vsyncpa [#allocation6], 1
    %1345 = vsyncpa [#allocation4], 1
    %1346 = vsyncpa [#allocation9], 1

</llo_original>
